<compile_context>
chip_gen: v7x
topology: tpu7x:2x2x1
jax: 0.10.0
libtpu: 0.0.40
codegen_flags: <defaults>
</compile_context>

<pallas_src>
from functools import partial

import jax
import jax.numpy as jnp
from jax.experimental import pallas as pl
from jax.experimental.pallas import tpu as pltpu


def _pixel_row_col(width_lanes, H, W):
    """(row, col) within the image of every lane position; shape (1, width)."""
    HW = H * W
    lane = jax.lax.broadcasted_iota(jnp.int32, (1, width_lanes), 1)
    # pixel index within the image (lanes are images concatenated back-to-back)
    if (HW & (HW - 1)) == 0:  # power of two: shifts/ands, no vector int div
        p = lane & (HW - 1)
    else:
        p = lane % HW
    if (W & (W - 1)) == 0:
        shift = W.bit_length() - 1
        return p >> shift, p & (W - 1)
    return p // W, p % W


def _inconv_kernel(x_ref, w_ref, o_ref, *, H, W, Cin, neg_slope):
    # x_ref: (Bt, Cin, H*W)   flattened NCHW images (one batch tile)
    # w_ref: (Cout, 9*Cin)    packed conv weights, column = (kh*3+kw)*Cin + ci
    # o_ref: (Bt, Cout, H*W)  flattened NCHW outputs (lane-dense last dim)
    HW = H * W
    Bt = x_ref.shape[0]
    WIDE = Bt * HW

    row, col = _pixel_row_col(WIDE, H, W)

    # Lane-concatenate the Bt images: (Cin, Bt*HW).  Offsets are multiples of
    # HW (a multiple of 128 here), so these are aligned lane copies.
    x_wide = jnp.concatenate(
        [x_ref[b].astype(jnp.float32) for b in range(Bt)], axis=1)

    w_mat = w_ref[...].astype(jnp.float32)  # (Cout, 9*Cin), VMEM resident

    cols = []
    for kh in range(3):
        for kw in range(3):
            dh, dw = kh - 1, kw - 1
            # rolled[q] = x_wide[q + dh*W + dw]; wrapped values (including
            # across image boundaries) are exactly the masked positions.
            shift = (-(dh * W + dw)) % WIDE
            t = x_wide if shift == 0 else pltpu.roll(x_wide, shift=shift, axis=1)
            conds = []
            if dw == -1:
                conds.append(col >= 1)
            elif dw == 1:
                conds.append(col <= W - 2)
            if dh == -1:
                conds.append(row >= 1)
            elif dh == 1:
                conds.append(row <= H - 2)
            mask = None
            for c in conds:
                mask = c if mask is None else jnp.logical_and(mask, c)
            if mask is not None:
                t = jnp.where(mask, t, 0.0)  # (1, WIDE) mask, bcast over Cin
            cols.append(t)
    xcol = jnp.concatenate(cols, axis=0)  # im2col: (9*Cin, Bt*HW)

    # ONE MXU matmul per grid step does the tap accumulation for every image
    # in the tile; the result is lane-dense.
    acc = jnp.dot(w_mat, xcol, preferred_element_type=jnp.float32)  # (Cout, WIDE)
    y = jnp.where(acc >= 0, acc, acc * neg_slope)  # fused LeakyReLU

    for b in range(Bt):  # HW-aligned static lane slices -> unmasked stores
        o_ref[b] = y[:, b * HW:(b + 1) * HW].astype(o_ref.dtype)


def _pick_batch_block(n, cap=8):
    """Largest batch tile <= cap that divides n, keeping >= 2 grid steps."""
    if n <= 1:
        return 1
    bt = min(cap, max(n // 2, 1))
    while n % bt:
        bt -= 1
    return max(bt, 1)


def inconv_forward(x_nchw, weight_oihw, neg_slope=0.01, batch_block=None):
    """Conv2d(k=3, s=1, p=1, bias=False) + LeakyReLU, PyTorch NCHW layout."""
    N, Cin, H, W = x_nchw.shape
    Cout = weight_oihw.shape[0]
    HW = H * W

    Bt = batch_block if batch_block is not None else _pick_batch_block(N)
    assert N % Bt == 0, "batch tile must divide batch size"

    # Free reshapes only (contiguous arrays): no pad / transpose HBM passes.
    x_flat = x_nchw.reshape(N, Cin, HW)
    # OIHW -> (Cout, kh, kw, Cin) -> (Cout, 9*Cin); column = (kh*3+kw)*Cin + ci
    w_mat = jnp.transpose(weight_oihw, (0, 2, 3, 1)).reshape(Cout, 9 * Cin)

    kernel = partial(_inconv_kernel, H=H, W=W, Cin=Cin, neg_slope=neg_slope)

    out_flat = pl.pallas_call(
        kernel,
        out_shape=jax.ShapeDtypeStruct((N, Cout, HW), x_nchw.dtype),
        grid_spec=pltpu.PrefetchScalarGridSpec(
            num_scalar_prefetch=0,
            grid=(N // Bt,),
            in_specs=[
                pl.BlockSpec((Bt, Cin, HW), lambda n: (n, 0, 0)),
                pl.BlockSpec((Cout, 9 * Cin), lambda n: (0, 0)),
            ],
            out_specs=pl.BlockSpec((Bt, Cout, HW), lambda n: (n, 0, 0)),
        ),
        compiler_params=pltpu.CompilerParams(
            dimension_semantics=("parallel",)),
    )(x_flat, w_mat)

    # Free reshape back to NCHW (no transpose needed).
    return out_flat.reshape(N, Cout, H, W)


if __name__ == "__main__":
    # Inconv(in_ch=4, out_ch=8) applied to a (2, 4, 16, 16) NCHW input.
    N, Cin, Cout, H, W = 2, 4, 8, 16, 16

    key = jax.random.PRNGKey(0)
    kx, kw = jax.random.split(key)
    x = jax.random.normal(kx, (N, Cin, H, W), dtype=jnp.float32)
    # Conv2d weight shape: (out_ch, in_ch, 3, 3)
    weight = 0.1 * jax.random.normal(kw, (Cout, Cin, 3, 3), dtype=jnp.float32)

    # Reference: XLA conv + leaky relu (PyTorch semantics).
    ref = jax.lax.conv_general_dilated(
        x, weight, window_strides=(1, 1), padding="SAME",
        dimension_numbers=("NCHW", "OIHW", "NCHW"))
    ref = jnp.where(ref >= 0, ref, 0.01 * ref)

    # Default batch tiling (Bt=1, 2 grid steps -> megacore-parallel on v7x).
    out = jax.block_until_ready(inconv_forward(x, weight))
    assert out.shape == (N, Cout, H, W)
    assert jnp.allclose(out, ref, atol=2e-5, rtol=2e-5)

    # Batched-lane path (Bt=2 images fused into one MXU matmul per step).
    out2 = jax.block_until_ready(inconv_forward(x, weight, batch_block=2))
    assert jnp.allclose(out2, ref, atol=2e-5, rtol=2e-5)

    print("KERNEL_OK")
</pallas_src>

<mosaic_0001>
module attributes {stable_mosaic.version = 11 : i64} {
  func.func @_inconv_kernel(%arg0: i32, %arg1: memref<1x4x256xf32, #tpu.memory_space<vmem>>, %arg2: memref<8x36xf32, #tpu.memory_space<vmem>>, %arg3: memref<1x8x256xf32, #tpu.memory_space<vmem>>) attributes {dimension_semantics = [#tpu.dimension_semantics<parallel>], iteration_bounds = array<i64: 2>, scalar_prefetch = 0 : i64, scratch_operands = 0 : i64, tpu.core_type = #tpu.core_type<tc>, window_params = [{transform_indices = @transform_0, window_bounds = array<i64: 1, 4, 256>}, {pipeline_mode = #tpu.pipeline_mode<synchronous>, transform_indices = @transform_1, window_bounds = array<i64: 8, 36>}, {transform_indices = @transform_2, window_bounds = array<i64: 1, 8, 256>}]} {
    %0 = tpu.iota {dimensions = array<i32: 1>} : vector<1x256xi32>
    %c255_i32 = arith.constant 255 : i32
    %1 = vector.broadcast %c255_i32 : i32 to vector<1x256xi32>
    %2 = arith.andi %0, %1 : vector<1x256xi32>
    %c4_i32 = arith.constant 4 : i32
    %3 = vector.broadcast %c4_i32 : i32 to vector<1x256xi32>
    %4 = arith.shrsi %2, %3 : vector<1x256xi32>
    %c15_i32 = arith.constant 15 : i32
    %5 = vector.broadcast %c15_i32 : i32 to vector<1x256xi32>
    %6 = arith.andi %2, %5 : vector<1x256xi32>
    %c0 = arith.constant 0 : index
    %c0_0 = arith.constant 0 : index
    %c0_1 = arith.constant 0 : index
    %7 = vector.load %arg1[%c0, %c0_0, %c0_1] : memref<1x4x256xf32, #tpu.memory_space<vmem>>, vector<1x4x256xf32>
    %8 = vector.shape_cast %7 : vector<1x4x256xf32> to vector<4x256xf32>
    %c0_2 = arith.constant 0 : index
    %c0_3 = arith.constant 0 : index
    %9 = vector.load %arg2[%c0_2, %c0_3] : memref<8x36xf32, #tpu.memory_space<vmem>>, vector<8x36xf32>
    %c17_i32 = arith.constant 17 : i32
    %10 = tpu.dynamic_rotate %8 by %c17_i32 dim 1 : vector<4x256xf32>, i32 -> vector<4x256xf32>
    %c1_i32 = arith.constant 1 : i32
    %11 = vector.broadcast %c1_i32 : i32 to vector<1x256xi32>
    %12 = arith.cmpi sge, %6, %11 : vector<1x256xi32>
    %c1_i32_4 = arith.constant 1 : i32
    %13 = vector.broadcast %c1_i32_4 : i32 to vector<1x256xi32>
    %14 = arith.cmpi sge, %4, %13 : vector<1x256xi32>
    %15 = arith.andi %12, %14 : vector<1x256xi1>
    %cst = arith.constant 0.000000e+00 : f32
    %16 = vector.shape_cast %15 : vector<1x256xi1> to vector<1x256xi1>
    %17 = vector.broadcast %16 : vector<1x256xi1> to vector<4x256xi1>
    %18 = vector.broadcast %cst : f32 to vector<4x256xf32>
    %19 = arith.select %17, %10, %18 : vector<4x256xi1>, vector<4x256xf32>
    %c16_i32 = arith.constant 16 : i32
    %20 = tpu.dynamic_rotate %8 by %c16_i32 dim 1 : vector<4x256xf32>, i32 -> vector<4x256xf32>
    %c1_i32_5 = arith.constant 1 : i32
    %21 = vector.broadcast %c1_i32_5 : i32 to vector<1x256xi32>
    %22 = arith.cmpi sge, %4, %21 : vector<1x256xi32>
    %cst_6 = arith.constant 0.000000e+00 : f32
    %23 = vector.shape_cast %22 : vector<1x256xi1> to vector<1x256xi1>
    %24 = vector.broadcast %23 : vector<1x256xi1> to vector<4x256xi1>
    %25 = vector.broadcast %cst_6 : f32 to vector<4x256xf32>
    %26 = arith.select %24, %20, %25 : vector<4x256xi1>, vector<4x256xf32>
    %c15_i32_7 = arith.constant 15 : i32
    %27 = tpu.dynamic_rotate %8 by %c15_i32_7 dim 1 : vector<4x256xf32>, i32 -> vector<4x256xf32>
    %c14_i32 = arith.constant 14 : i32
    %28 = vector.broadcast %c14_i32 : i32 to vector<1x256xi32>
    %29 = arith.cmpi sle, %6, %28 : vector<1x256xi32>
    %c1_i32_8 = arith.constant 1 : i32
    %30 = vector.broadcast %c1_i32_8 : i32 to vector<1x256xi32>
    %31 = arith.cmpi sge, %4, %30 : vector<1x256xi32>
    %32 = arith.andi %29, %31 : vector<1x256xi1>
    %cst_9 = arith.constant 0.000000e+00 : f32
    %33 = vector.shape_cast %32 : vector<1x256xi1> to vector<1x256xi1>
    %34 = vector.broadcast %33 : vector<1x256xi1> to vector<4x256xi1>
    %35 = vector.broadcast %cst_9 : f32 to vector<4x256xf32>
    %36 = arith.select %34, %27, %35 : vector<4x256xi1>, vector<4x256xf32>
    %c1_i32_10 = arith.constant 1 : i32
    %37 = tpu.dynamic_rotate %8 by %c1_i32_10 dim 1 : vector<4x256xf32>, i32 -> vector<4x256xf32>
    %c1_i32_11 = arith.constant 1 : i32
    %38 = vector.broadcast %c1_i32_11 : i32 to vector<1x256xi32>
    %39 = arith.cmpi sge, %6, %38 : vector<1x256xi32>
    %cst_12 = arith.constant 0.000000e+00 : f32
    %40 = vector.shape_cast %39 : vector<1x256xi1> to vector<1x256xi1>
    %41 = vector.broadcast %40 : vector<1x256xi1> to vector<4x256xi1>
    %42 = vector.broadcast %cst_12 : f32 to vector<4x256xf32>
    %43 = arith.select %41, %37, %42 : vector<4x256xi1>, vector<4x256xf32>
    %c255_i32_13 = arith.constant 255 : i32
    %44 = tpu.dynamic_rotate %8 by %c255_i32_13 dim 1 : vector<4x256xf32>, i32 -> vector<4x256xf32>
    %c14_i32_14 = arith.constant 14 : i32
    %45 = vector.broadcast %c14_i32_14 : i32 to vector<1x256xi32>
    %46 = arith.cmpi sle, %6, %45 : vector<1x256xi32>
    %cst_15 = arith.constant 0.000000e+00 : f32
    %47 = vector.shape_cast %46 : vector<1x256xi1> to vector<1x256xi1>
    %48 = vector.broadcast %47 : vector<1x256xi1> to vector<4x256xi1>
    %49 = vector.broadcast %cst_15 : f32 to vector<4x256xf32>
    %50 = arith.select %48, %44, %49 : vector<4x256xi1>, vector<4x256xf32>
    %c241_i32 = arith.constant 241 : i32
    %51 = tpu.dynamic_rotate %8 by %c241_i32 dim 1 : vector<4x256xf32>, i32 -> vector<4x256xf32>
    %c1_i32_16 = arith.constant 1 : i32
    %52 = vector.broadcast %c1_i32_16 : i32 to vector<1x256xi32>
    %53 = arith.cmpi sge, %6, %52 : vector<1x256xi32>
    %c14_i32_17 = arith.constant 14 : i32
    %54 = vector.broadcast %c14_i32_17 : i32 to vector<1x256xi32>
    %55 = arith.cmpi sle, %4, %54 : vector<1x256xi32>
    %56 = arith.andi %53, %55 : vector<1x256xi1>
    %cst_18 = arith.constant 0.000000e+00 : f32
    %57 = vector.shape_cast %56 : vector<1x256xi1> to vector<1x256xi1>
    %58 = vector.broadcast %57 : vector<1x256xi1> to vector<4x256xi1>
    %59 = vector.broadcast %cst_18 : f32 to vector<4x256xf32>
    %60 = arith.select %58, %51, %59 : vector<4x256xi1>, vector<4x256xf32>
    %c240_i32 = arith.constant 240 : i32
    %61 = tpu.dynamic_rotate %8 by %c240_i32 dim 1 : vector<4x256xf32>, i32 -> vector<4x256xf32>
    %c14_i32_19 = arith.constant 14 : i32
    %62 = vector.broadcast %c14_i32_19 : i32 to vector<1x256xi32>
    %63 = arith.cmpi sle, %4, %62 : vector<1x256xi32>
    %cst_20 = arith.constant 0.000000e+00 : f32
    %64 = vector.shape_cast %63 : vector<1x256xi1> to vector<1x256xi1>
    %65 = vector.broadcast %64 : vector<1x256xi1> to vector<4x256xi1>
    %66 = vector.broadcast %cst_20 : f32 to vector<4x256xf32>
    %67 = arith.select %65, %61, %66 : vector<4x256xi1>, vector<4x256xf32>
    %c239_i32 = arith.constant 239 : i32
    %68 = tpu.dynamic_rotate %8 by %c239_i32 dim 1 : vector<4x256xf32>, i32 -> vector<4x256xf32>
    %c14_i32_21 = arith.constant 14 : i32
    %69 = vector.broadcast %c14_i32_21 : i32 to vector<1x256xi32>
    %70 = arith.cmpi sle, %6, %69 : vector<1x256xi32>
    %c14_i32_22 = arith.constant 14 : i32
    %71 = vector.broadcast %c14_i32_22 : i32 to vector<1x256xi32>
    %72 = arith.cmpi sle, %4, %71 : vector<1x256xi32>
    %73 = arith.andi %70, %72 : vector<1x256xi1>
    %cst_23 = arith.constant 0.000000e+00 : f32
    %74 = vector.shape_cast %73 : vector<1x256xi1> to vector<1x256xi1>
    %75 = vector.broadcast %74 : vector<1x256xi1> to vector<4x256xi1>
    %76 = vector.broadcast %cst_23 : f32 to vector<4x256xf32>
    %77 = arith.select %75, %68, %76 : vector<4x256xi1>, vector<4x256xf32>
    %78 = tpu.concatenate %19, %26, %36, %43, %8, %50, %60, %67, %77 in 0 : vector<4x256xf32>, vector<4x256xf32>, vector<4x256xf32>, vector<4x256xf32>, vector<4x256xf32>, vector<4x256xf32>, vector<4x256xf32>, vector<4x256xf32>, vector<4x256xf32> -> vector<36x256xf32>
    %cst_24 = arith.constant dense<0.000000e+00> : vector<8x256xf32>
    %79 = tpu.matmul %9, %78, %cst_24 {dimension_numbers = #tpu.dot_dimension_numbers<[1], [0], [0], [1], [0, 0, 1, 1], [], []>} : vector<8x36xf32>, vector<36x256xf32>, vector<8x256xf32> -> vector<8x256xf32>
    %cst_25 = arith.constant 0.000000e+00 : f32
    %80 = vector.broadcast %cst_25 : f32 to vector<8x256xf32>
    %81 = arith.cmpf oge, %79, %80 : vector<8x256xf32>
    %cst_26 = arith.constant 0.00999999977 : f32
    %82 = vector.broadcast %cst_26 : f32 to vector<8x256xf32>
    %83 = arith.mulf %79, %82 : vector<8x256xf32>
    %84 = arith.select %81, %79, %83 : vector<8x256xi1>, vector<8x256xf32>
    %c0_27 = arith.constant 0 : index
    %c0_28 = arith.constant 0 : index
    %c0_29 = arith.constant 0 : index
    %85 = vector.load %arg3[%c0_27, %c0_28, %c0_29] : memref<1x8x256xf32, #tpu.memory_space<vmem>>, vector<1x8x256xf32>
    %86 = vector.shape_cast %85 : vector<1x8x256xf32> to vector<8x256xf32>
    %87 = vector.shape_cast %84 : vector<8x256xf32> to vector<1x8x256xf32>
    tpu.vector_store %arg3[%c0_27, %c0_28, %c0_29], %87 {strides = array<i32>} : memref<1x8x256xf32, #tpu.memory_space<vmem>>, vector<1x8x256xf32>,
    return
  }
  func.func @transform_0(%arg0: i32) -> (i32, i32, i32) {
    %c0_i32 = arith.constant 0 : i32
    %c0_i32_0 = arith.constant 0 : i32
    %c0_i32_1 = arith.constant 0 : i32
    return %arg0, %c0_i32, %c0_i32_0 : i32, i32, i32
  }
  func.func @transform_1(%arg0: i32) -> (i32, i32) {
    %c0_i32 = arith.constant 0 : i32
    %c0_i32_0 = arith.constant 0 : i32
    %c0_i32_1 = arith.constant 0 : i32
    return %c0_i32, %c0_i32_0 : i32, i32
  }
  func.func @transform_2(%arg0: i32) -> (i32, i32, i32) {
    %c0_i32 = arith.constant 0 : i32
    %c0_i32_0 = arith.constant 0 : i32
    %c0_i32_1 = arith.constant 0 : i32
    return %arg0, %c0_i32, %c0_i32_0 : i32, i32, i32
  }
}

</mosaic_0001>

<llo_original>
// kernel: tpu_custom_call.1
$region0: #{tpu_custom_call.1}
  #allocation0 [shape = 'u32[]', space=smem, size = 0x4, offset = 0x4, fixed_abs, tag = 'smem constant byte address 0x4 - core index']
  #allocation1 [shape = 'u32[144,128]{1,0:T(1,128)}', space=vmem, size = 0x12000, scoped, tag = 'internal scratch']
  %s0 = inlined_call_operand.hbm [shape: f32[2,4,256], index: 0, kind: input, shape index: {}]
  %s1 = inlined_call_operand.hbm [shape: f32[8,36], index: 1, kind: input, shape index: {}]
  %s2 = inlined_call_operand.hbm [shape: f32[2,8,256], index: 2, kind: output, shape index: {}]
  %s3 = sld [smem:[#allocation0]]
  $region49: #{tpu_custom_call.1} parent=0
    _
  %s5 = ssub.s32 1, %s3
  %s6 = scalar_select 0, %s5, %s3
  $region1: #{tpu_custom_call.1} parent=0
    #allocation2 [shape = 'u8[8192]{0}', space=vmem, size = 0x2000, scoped, tag = 'input window, operand 0']
    #allocation3 [shape = 's32[2]{0}', space=sflag, size = 0x8, scoped, tag = 'scoped memory for tpu_custom_call.1']
    #allocation4 [shape = 's32[2]{0}', space=sflag, size = 0x8, scoped, tag = 'scoped memory for tpu_custom_call.1']
    #allocation5 [shape = 'u8[4096]{0}', space=vmem, size = 0x1000, scoped, tag = 'input window, operand 1, single buffered']
    #allocation6 [shape = 's32[1]{0}', space=sflag, size = 0x4, scoped, tag = 'scoped memory for tpu_custom_call.1']
    #allocation7 [shape = 'u8[16384]{0}', space=vmem, size = 0x4000, scoped, tag = 'output window, operand 0']
    %7 = vsyncpa [#allocation3], 0
    %s8 = scalar_lea.sflag [#allocation3], 1
    %9 = vsyncpa %s8, 0
    %10 = vsyncpa [#allocation6], 0
    %11 = vsyncpa [#allocation4], 0
    %s12 = scalar_lea.sflag [#allocation4], 1
    %13 = vsyncpa %s12, 0
    loop: start=0, step=1, limit=4
    $region2: #{tpu_custom_call.1} parent=1 // loop_pre_header
      _
    $region3: #{tpu_custom_call.1} parent=1 // loop_header
      %s15 = sphi 0, %s19
      %p16 = scmp.ge.s32.totalorder %s15, 4
      %s25 = sphi 0, %s27
      %s28 = sphi 0, %s25
      %s29 = sphi 0, %s28
      %s45 = sphi 0, %s29
      %s49 = sphi 0, %s49
      %s51 = sphi 0, %s49
      %s52 = sphi 0, %s51
      %s66 = sphi 0, %s52
      %s72 = sphi 0, %s74
      %s75 = sphi 0, %s72
      %s76 = sphi 0, %s75
      %s92 = sphi 0, %s76
    $region4: #{tpu_custom_call.1} parent=1 // loop_header_branch
      %18 = sbr.rel (%p16) target = $region8
    $region5: #{tpu_custom_call.1} parent=1 // loop_body
      %s20 = ssub.s32 %s15, 1
      %s21 = ssub.s32 %s15, 2
      %s22 = sadd.s32 %s15, 1
      %s23 = ssub.s32 %s15, %s22
      %p24 = scmp.eq.s32.totalorder %s23, 0
      %s26 = sadd.s32 %s25, 1
      %s27 = scalar_select %p24, %s25, %s26
      %p30 = pneg %p24
      %p31 = scmp.eq.s32.totalorder %s15, 1
      %p32 = por %p30, %p31
      %p33 = scmp.ne.s32.totalorder %s25, %s28
      %p34 = scmp.eq.s32.totalorder %s15, 0
      %p35 = por %p33, %p34
      %p36 = scmp.ne.s32.totalorder %s25, %s28
      %p37 = scmp.eq.s32.totalorder %s20, 1
      %p38 = por %p36, %p37
      %p39 = scmp.ne.s32.totalorder %s28, %s29
      %p40 = scmp.eq.s32.totalorder %s20, 0
      %p41 = por %p39, %p40
      %p42 = scmp.ne.s32.totalorder %s28, %s29
      %p43 = scmp.eq.s32.totalorder %s21, 1
      %p44 = por %p42, %p43
      %p46 = scmp.ne.s32.totalorder %s29, %s45
      %p47 = scmp.eq.s32.totalorder %s21, 0
      %p48 = por %p46, %p47
      %s50 = sadd.s32 %s49, 1
      %p53 = scmp.eq.s32.totalorder %s15, 1
      %p54 = scmp.ne.s32.totalorder %s49, %s51
      %p55 = scmp.eq.s32.totalorder %s15, 0
      %p56 = por %p54, %p55
      %p57 = scmp.ne.s32.totalorder %s49, %s51
      %p58 = scmp.eq.s32.totalorder %s20, 1
      %p59 = por %p57, %p58
      %p60 = scmp.ne.s32.totalorder %s51, %s52
      %p61 = scmp.eq.s32.totalorder %s20, 0
      %p62 = por %p60, %p61
      %p63 = scmp.ne.s32.totalorder %s51, %s52
      %p64 = scmp.eq.s32.totalorder %s21, 1
      %p65 = por %p63, %p64
      %p67 = scmp.ne.s32.totalorder %s52, %s66
      %p68 = scmp.eq.s32.totalorder %s21, 0
      %p69 = por %p67, %p68
      %s70 = ssub.s32 %s15, %s22
      %p71 = scmp.eq.s32.totalorder %s70, 0
      %s73 = sadd.s32 %s72, 1
      %s74 = scalar_select %p71, %s72, %s73
      %p77 = pneg %p71
      %p78 = scmp.eq.s32.totalorder %s15, 1
      %p79 = por %p77, %p78
      %p80 = scmp.ne.s32.totalorder %s72, %s75
      %p81 = scmp.eq.s32.totalorder %s15, 0
      %p82 = por %p80, %p81
      %p83 = scmp.ne.s32.totalorder %s72, %s75
      %p84 = scmp.eq.s32.totalorder %s20, 1
      %p85 = por %p83, %p84
      %p86 = scmp.ne.s32.totalorder %s75, %s76
      %p87 = scmp.eq.s32.totalorder %s20, 0
      %p88 = por %p86, %p87
      %p89 = scmp.ne.s32.totalorder %s75, %s76
      %p90 = scmp.eq.s32.totalorder %s21, 1
      %p91 = por %p89, %p90
      %p93 = scmp.ne.s32.totalorder %s76, %s92
      %p94 = scmp.eq.s32.totalorder %s21, 0
      %p95 = por %p93, %p94
      %p96 = scmp.le.s32.totalorder 1, %s15
      %p97 = scmp.lt.s32.totalorder %s15, 3
      %p98 = pnand %p96, %p97
      %p99 = pneg %p98
      // Predicated region
      $region9: #{tpu_custom_call.1} parent=5 // pred_check
        _
      $region10: #{tpu_custom_call.1} parent=5 // pred_check_branch
        %101 = sbr.rel (%p98) target = $region12
      $region11: #{tpu_custom_call.1} parent=5 // pred_region
        %s102 = ssub.s32 %s15, 1
        // Predicated region
        $region13: #{tpu_custom_call.1} parent=11 // pred_check
          %p103 = pneg %p62
        $region14: #{tpu_custom_call.1} parent=11 // pred_check_branch
          %105 = sbr.rel (%p103) target = $region16
        $region15: #{tpu_custom_call.1} parent=11 // pred_region
          %s107 = ssub.s32 128, 128
          %108 = vsyncadd [#allocation6], %s107
          %s110 = sshll.u32 [#allocation5], 4
          %s111 = int_to_ptr.vmem [resolvable:$true] %s110
          %113 = dma.hbm_to_vmem [thread:$0]  %s1, 128, %s111, [#allocation6]
        $region16: #{tpu_custom_call.1} parent=11 // pred_fallthru
          _
      $region12: #{tpu_custom_call.1} parent=5 // pred_fallthru
        _
      %p114 = scmp.lt.s32.totalorder %s15, 2
      // Predicated region
      $region17: #{tpu_custom_call.1} parent=5 // pred_check
        %p115 = pneg %p114
      $region18: #{tpu_custom_call.1} parent=5 // pred_check_branch
        %117 = sbr.rel (%p115) target = $region20
      $region19: #{tpu_custom_call.1} parent=5 // pred_region
        // Predicated region
        $region21: #{tpu_custom_call.1} parent=19 // pred_check
          %p118 = pneg %p35
        $region22: #{tpu_custom_call.1} parent=19 // pred_check_branch
          %120 = sbr.rel (%p118) target = $region24
        $region23: #{tpu_custom_call.1} parent=19 // pred_region
          %s121 = sand.u32 %s25, 1
          %s122 = scalar_lea.sflag [#allocation3], %s121
          %s123 = sand.u32 %s25, 1
          %s124 = smul.addr %s123, 8
          %s125 = scalar_lea.vmem [#allocation2], %s124
          %s127 = ssub.s32 128, 128
          %128 = vsyncadd %s122, %s127
          %s129 = smul.addr %s15, 2
          %s130 = smul.addr %s129, 64
          %s131 = scalar_lea.hbm %s0, %s130
          %s133 = sshll.u32 %s125, 4
          %s134 = int_to_ptr.vmem [resolvable:$true] %s133
          %136 = dma.hbm_to_vmem [thread:$0]  %s131, 128, %s134, %s122
        $region24: #{tpu_custom_call.1} parent=19 // pred_fallthru
          _
      $region20: #{tpu_custom_call.1} parent=5 // pred_fallthru
        _
      %p137 = scmp.le.s32.totalorder 1, %s15
      %p138 = scmp.lt.s32.totalorder %s15, 3
      %p139 = pnand %p137, %p138
      %p140 = pneg %p139
      // Predicated region
      $region25: #{tpu_custom_call.1} parent=5 // pred_check
        _
      $region26: #{tpu_custom_call.1} parent=5 // pred_check_branch
        %142 = sbr.rel (%p139) target = $region28
      $region27: #{tpu_custom_call.1} parent=5 // pred_region
        %s143 = ssub.s32 %s15, 1
        %s144 = sand.u32 %s28, 1
        %s145 = scalar_lea.sflag [#allocation3], %s144
        %s146 = sand.u32 %s28, 1
        %s147 = smul.addr %s146, 8
        %s148 = scalar_lea.vmem [#allocation2], %s147
        // Predicated region
        $region29: #{tpu_custom_call.1} parent=27 // pred_check
          %p149 = pneg %p41
        $region30: #{tpu_custom_call.1} parent=27 // pred_check_branch
          %151 = sbr.rel (%p149) target = $region32
        $region31: #{tpu_custom_call.1} parent=27 // pred_region
          %152 = dma.done %s145, 128
        $region32: #{tpu_custom_call.1} parent=27 // pred_fallthru
          _
        // Predicated region
        $region33: #{tpu_custom_call.1} parent=27 // pred_check
          %p153 = pneg %p62
        $region34: #{tpu_custom_call.1} parent=27 // pred_check_branch
          %155 = sbr.rel (%p153) target = $region36
        $region35: #{tpu_custom_call.1} parent=27 // pred_region
          %156 = dma.done [#allocation6], 128
        $region36: #{tpu_custom_call.1} parent=27 // pred_fallthru
          _
        %s157 = sand.u32 %s28, 1
        %s158 = scalar_lea.sflag [#allocation3], %s157
        %s159 = sand.u32 %s28, 1
        %s160 = smul.addr %s159, 8
        %s161 = scalar_lea.vmem [#allocation2], %s160
        %p162 = pneg %p41
        %p163 = pneg %p38
        %p164 = pneg %p62
        %p165 = pneg %p59
        %p166 = pneg %p88
        %p167 = pneg %p85
        %s168 = sand.u32 %s75, 1
        %s169 = scalar_lea.sflag [#allocation4], %s168
        %s170 = sand.u32 %s75, 1
        %s171 = smul.addr %s170, 16
        %s172 = scalar_lea.vmem [#allocation7], %s171
        %v173 = vlaneseq
        %v174 = vand.u32 %v173, 127
        %v175 = vadd.s32 %v174, 128
        %v176 = vand.u32 %v174, 255
        %v177 = vand.u32 %v175, 255
        %v178 = vshra.s32 %v176, 4
        %v179 = vshra.s32 %v177, 4
        %v180 = vand.u32 %v176, 15
        %v181 = vand.u32 %v177, 15
        %v182 = vld [vmem:[%s148] sm:$0xff]
        %v183 = vld [vmem:[#allocation5] sm:$0xff]
        %v185 = vcombine.high %v182, %v182
        %187 = vrot.lane.b32.xlu0 %v182, 17
        %v188 = vpop.permute.xlu0 %187
        %189 = vrot.lane.b32.xlu0 %v185, 17
        %v190 = vpop.permute.xlu0 %189
        %vm191 = vcmp.lt.s32.totalorder %v174, 17
        %v192 = vsel %vm191, %v188, %v190
        %v193 = vsel %vm191, %v190, %v188
        %vm194 = vcmp.ge.s32.totalorder %v180, 1
        %vm195 = vcmp.ge.s32.totalorder %v181, 1
        %vm196 = vcmp.ge.s32.totalorder %v178, 1
        %vm197 = vcmp.ge.s32.totalorder %v179, 1
        %vm198 = vmand %vm194, %vm196
        %vm199 = vmand %vm195, %vm197
        %v200 = vsel %vm198, 1, 0
        %v201 = vsel %vm199, 1, 0
        %vm202 = vcmp.eq.s32.totalorder %v200, 1
        %vm203 = vcmp.eq.s32.totalorder %v201, 1
        %v204 = vsel %vm202, %v193, 0.0
        %v205 = vsel %vm203, %v192, 0.0
        %206 = vrot.lane.b32.xlu0 %v182, 16
        %v207 = vpop.permute.xlu0 %206
        %208 = vrot.lane.b32.xlu0 %v185, 16
        %v209 = vpop.permute.xlu0 %208
        %vm210 = vcmp.lt.s32.totalorder %v174, 16
        %v211 = vsel %vm210, %v207, %v209
        %v212 = vsel %vm210, %v209, %v207
        %v213 = vsel %vm196, 1, 0
        %v214 = vsel %vm197, 1, 0
        %vm215 = vcmp.eq.s32.totalorder %v213, 1
        %vm216 = vcmp.eq.s32.totalorder %v214, 1
        %v217 = vsel %vm215, %v212, 0.0
        %v218 = vsel %vm216, %v211, 0.0
        %219 = vrot.lane.b32.xlu0 %v182, 15
        %v220 = vpop.permute.xlu0 %219
        %221 = vrot.lane.b32.xlu0 %v185, 15
        %v222 = vpop.permute.xlu0 %221
        %vm223 = vcmp.lt.s32.totalorder %v174, 15
        %v224 = vsel %vm223, %v220, %v222
        %v225 = vsel %vm223, %v222, %v220
        %vm226 = vcmp.le.s32.totalorder %v180, 14
        %vm227 = vcmp.le.s32.totalorder %v181, 14
        %vm228 = vmand %vm226, %vm196
        %vm229 = vmand %vm227, %vm197
        %v230 = vsel %vm228, 1, 0
        %v231 = vsel %vm229, 1, 0
        %vm232 = vcmp.eq.s32.totalorder %v230, 1
        %vm233 = vcmp.eq.s32.totalorder %v231, 1
        %v234 = vsel %vm232, %v225, 0.0
        %v235 = vsel %vm233, %v224, 0.0
        %236 = vrot.lane.b32.xlu0 %v182, 1
        %v237 = vpop.permute.xlu0 %236
        %238 = vrot.lane.b32.xlu0 %v185, 1
        %v239 = vpop.permute.xlu0 %238
        %vm240 = vcmp.lt.s32.totalorder %v174, 1
        %v241 = vsel %vm240, %v237, %v239
        %v242 = vsel %vm240, %v239, %v237
        %v243 = vsel %vm194, 1, 0
        %v244 = vsel %vm195, 1, 0
        %vm245 = vcmp.eq.s32.totalorder %v243, 1
        %vm246 = vcmp.eq.s32.totalorder %v244, 1
        %v247 = vsel %vm245, %v242, 0.0
        %v248 = vsel %vm246, %v241, 0.0
        %249 = vrot.lane.b32.xlu0 %v182, 127
        %v250 = vpop.permute.xlu0 %249
        %251 = vrot.lane.b32.xlu0 %v185, 127
        %v252 = vpop.permute.xlu0 %251
        %vm253 = vcmp.lt.s32.totalorder %v174, 127
        %v254 = vsel %vm253, %v250, %v252
        %v255 = vsel %vm253, %v252, %v250
        %v256 = vsel %vm226, 1, 0
        %v257 = vsel %vm227, 1, 0
        %vm258 = vcmp.eq.s32.totalorder %v256, 1
        %vm259 = vcmp.eq.s32.totalorder %v257, 1
        %v260 = vsel %vm258, %v254, 0.0
        %v261 = vsel %vm259, %v255, 0.0
        %262 = vrot.lane.b32.xlu0 %v182, 113
        %v263 = vpop.permute.xlu0 %262
        %264 = vrot.lane.b32.xlu0 %v185, 113
        %v265 = vpop.permute.xlu0 %264
        %vm266 = vcmp.lt.s32.totalorder %v174, 113
        %v267 = vsel %vm266, %v263, %v265
        %v268 = vsel %vm266, %v265, %v263
        %vm269 = vcmp.le.s32.totalorder %v178, 14
        %vm270 = vcmp.le.s32.totalorder %v179, 14
        %vm271 = vmand %vm194, %vm269
        %vm272 = vmand %vm195, %vm270
        %v273 = vsel %vm271, 1, 0
        %v274 = vsel %vm272, 1, 0
        %vm275 = vcmp.eq.s32.totalorder %v273, 1
        %vm276 = vcmp.eq.s32.totalorder %v274, 1
        %v277 = vsel %vm275, %v267, 0.0
        %v278 = vsel %vm276, %v268, 0.0
        %279 = vrot.lane.b32.xlu0 %v182, 112
        %v280 = vpop.permute.xlu0 %279
        %281 = vrot.lane.b32.xlu0 %v185, 112
        %v282 = vpop.permute.xlu0 %281
        %vm283 = vcmp.lt.s32.totalorder %v174, 112
        %v284 = vsel %vm283, %v280, %v282
        %v285 = vsel %vm283, %v282, %v280
        %v286 = vsel %vm269, 1, 0
        %v287 = vsel %vm270, 1, 0
        %vm288 = vcmp.eq.s32.totalorder %v286, 1
        %vm289 = vcmp.eq.s32.totalorder %v287, 1
        %v290 = vsel %vm288, %v284, 0.0
        %v291 = vsel %vm289, %v285, 0.0
        %292 = vrot.lane.b32.xlu0 %v182, 111
        %v293 = vpop.permute.xlu0 %292
        %294 = vrot.lane.b32.xlu0 %v185, 111
        %v295 = vpop.permute.xlu0 %294
        %vm296 = vcmp.lt.s32.totalorder %v174, 111
        %v297 = vsel %vm296, %v293, %v295
        %v298 = vsel %vm296, %v295, %v293
        %vm299 = vmand %vm226, %vm269
        %vm300 = vmand %vm227, %vm270
        %v301 = vsel %vm299, 1, 0
        %v302 = vsel %vm300, 1, 0
        %vm303 = vcmp.eq.s32.totalorder %v301, 1
        %vm304 = vcmp.eq.s32.totalorder %v302, 1
        %v305 = vsel %vm303, %v297, 0.0
        %v306 = vsel %vm304, %v298, 0.0
        %v309 = vrot.slane %v217, 4
        %v310 = vrot.slane %v218, 4
        %v315 = vrot.slane %v247, 4
        %v316 = vrot.slane %v248, 4
        %v321 = vrot.slane %v260, 4
        %v322 = vrot.slane %v261, 4
        %v327 = vrot.slane %v290, 4
        %v328 = vrot.slane %v291, 4
        %vm331 = vcmask 1043456
        %v332 = vsel %vm331, %v204, %v309
        %v333 = vsel %vm331, %v205, %v310
        %v334 = vsel %vm331, %v234, %v315
        %v335 = vsel %vm331, %v235, %v316
        %v336 = vsel %vm331, %v182, %v321
        %v337 = vsel %vm331, %v185, %v322
        %v338 = vsel %vm331, %v277, %v327
        %v339 = vsel %vm331, %v278, %v328
        %vm340 = vcmask 293888
        %v342 = vsel %vm340, %v183, 0
        %v345 = vsel %vm331, %v305, 0
        %v348 = vsel %vm331, %v306, 0
        %350 = vmatprep.subr.mxu0 %v333
        %351 = vmatpush1.msra.mxu0 %v332
        %352 = vmatprep.subr.mxu0 %v335
        %353 = vmatpush1.msra.mxu0 %v334
        %354 = vmatprep.subr.mxu0 %v337
        %355 = vmatpush1.msra.mxu0 %v336
        %356 = vmatprep.subr.mxu0 %v339
        %357 = vmatpush1.msra.mxu0 %v338
        %358 = vmatprep.subr.mxu0 %v348
        %359 = vmatpush1.msra.mxu0 %v345
        %360 = vmatprep.subr.mxu0 0.0
        %361 = vmatpush1.msra.mxu0 0.0
        %362 = vmatprep.subr.mxu0 0.0
        %363 = vmatpush1.msra.mxu0 0.0
        %364 = vmatprep.subr.mxu0 0.0
        %365 = vmatpush1.msra.mxu0 0.0
        %366 = vmatprep.subr.mxu0 0.0
        %367 = vmatpush1.msra.mxu0 0.0
        %368 = vmatprep.subr.mxu0 0.0
        %369 = vmatpush1.msra.mxu0 0.0
        %370 = vmatprep.subr.mxu0 0.0
        %371 = vmatpush1.msra.mxu0 0.0
        %372 = vmatprep.subr.mxu0 0.0
        %373 = vmatpush1.msra.mxu0 0.0
        %374 = vmatprep.subr.mxu0 0.0
        %375 = vmatpush1.msra.mxu0 0.0
        %376 = vmatprep.subr.mxu0 0.0
        %377 = vmatpush1.msra.mxu0 0.0
        %378 = vmatprep.subr.mxu0 0.0
        %379 = vmatpush1.msra.mxu0 0.0
        %380 = vmatprep.subr.mxu0 0.0
        %381 = vmatpush1.msra.mxu0 0.0
        %382 = vmatprep.subr.mxu0 0.0
        %383 = vmatpush1.msra.mxu0 0.0
        %384 = vmatprep.subr.mxu0 0.0
        %385 = vmatpush1.msra.mxu0 0.0
        %386 = vmatprep.subr.mxu0 0.0
        %387 = vmatpush1.msra.mxu0 0.0
        %388 = vmatprep.subr.mxu0 0.0
        %389 = vmatpush1.msra.mxu0 0.0
        %390 = vmatprep.subr.mxu0 0.0
        %391 = vmatpush1.msra.mxu0 0.0
        %392 = vmatprep.subr.mxu0 0.0
        %393 = vmatpush1.msra.mxu0 0.0
        %394 = vmatprep.subr.mxu0 0.0
        %395 = vmatpush1.msra.mxu0 0.0
        %396 = vmatprep.subr.mxu0 0.0
        %397 = vmatpush1.msra.mxu0 0.0
        %398 = vmatprep.subr.mxu0 0.0
        %399 = vmatpush1.msra.mxu0 0.0
        %400 = vmatprep.subr.mxu0 0.0
        %401 = vmatpush1.msra.mxu0 0.0
        %402 = vmatprep.subr.mxu0 0.0
        %403 = vmatpush1.msra.mxu0 0.0
        %404 = vmatprep.subr.mxu0 0.0
        %405 = vmatpush1.msra.mxu0 0.0
        %406 = vmatprep.subr.mxu0 0.0
        %407 = vmatpush1.msra.mxu0 0.0
        %408 = vmatprep.subr.mxu0 0.0
        %409 = vmatpush1.msra.mxu0 0.0
        %410 = vmatprep.subr.mxu0 0.0
        %411 = vmatpush1.msra.mxu0 0.0
        %412 = vmatprep.subr.mxu0 0.0
        %413 = vmatpush1.msra.mxu0 0.0
        %414 = vmatprep.mubr.f32.mxu0 0.0
        %415 = vmatmul.mubr.f32.gmra.mrb[0].mxu0 %v342
        %v416 = vpop.f32.mrb[0].mxu0
        %v417 = vadd.f32 0.0, %v416
        %v418 = vpop.f32.mrb[0].mxu0
        %v419 = vadd.f32 0.0, %v418
        %420 = vdwg.mxu0
        %vm421 = vcmp.ge.f32.partialorder %v417, 0.0
        %vm422 = vcmp.ge.f32.partialorder %v419, 0.0
        %v423 = vmul.f32 %v417, 0.01
        %v424 = vmul.f32 %v419, 0.01
        %v425 = vsel %vm421, %v417, %v423
        %v426 = vsel %vm422, %v419, %v424
        %427 = vst [vmem:[%s172] sm:$0xff] %v425
        %428 = vst [vmem:[%s172 + $0x8] sm:$0xff] %v426
        %s429 = sand.u32 %s75, 1
        %s430 = scalar_lea.sflag [#allocation4], %s429
        %s431 = sand.u32 %s75, 1
        %s432 = smul.addr %s431, 16
        %s433 = scalar_lea.vmem [#allocation7], %s432
        // Predicated region
        $region37: #{tpu_custom_call.1} parent=27 // pred_check
          %p434 = pneg %p85
        $region38: #{tpu_custom_call.1} parent=27 // pred_check_branch
          %436 = sbr.rel (%p434) target = $region40
        $region39: #{tpu_custom_call.1} parent=27 // pred_region
          %s438 = ssub.s32 256, 256
          %439 = vsyncadd %s430, %s438
          %s440 = smul.addr %s20, 2
          %s441 = smul.addr %s440, 128
          %s442 = scalar_lea.hbm %s2, %s441
          %s444 = sshll.u32 %s433, 4
          %s445 = int_to_ptr.vmem [resolvable:$true] %s444
          %447 = dma.vmem_to_hbm [thread:$0]  %s445, 256, %s442, %s430
        $region40: #{tpu_custom_call.1} parent=27 // pred_fallthru
          _
      $region28: #{tpu_custom_call.1} parent=5 // pred_fallthru
        _
      %p448 = scmp.le.s32.totalorder 2, %s15
      // Predicated region
      $region41: #{tpu_custom_call.1} parent=5 // pred_check
        %p449 = pneg %p448
      $region42: #{tpu_custom_call.1} parent=5 // pred_check_branch
        %451 = sbr.rel (%p449) target = $region44
      $region43: #{tpu_custom_call.1} parent=5 // pred_region
        %s452 = ssub.s32 %s15, 2
        // Predicated region
        $region45: #{tpu_custom_call.1} parent=43 // pred_check
          %p453 = pneg %p91
        $region46: #{tpu_custom_call.1} parent=43 // pred_check_branch
          %455 = sbr.rel (%p453) target = $region48
        $region47: #{tpu_custom_call.1} parent=43 // pred_region
          %s456 = sand.u32 %s76, 1
          %s457 = scalar_lea.sflag [#allocation4], %s456
          %s458 = sand.u32 %s76, 1
          %s459 = smul.addr %s458, 16
          %s460 = scalar_lea.vmem [#allocation7], %s459
          %461 = dma.done %s457, 256
        $region48: #{tpu_custom_call.1} parent=43 // pred_fallthru
          _
      $region44: #{tpu_custom_call.1} parent=5 // pred_fallthru
        _
    $region6: #{tpu_custom_call.1} parent=1 // loop_footer
      %s19 = sadd.s32 1, %s15
    $region7: #{tpu_custom_call.1} parent=1 // loop_footer_branch
      %14 = sbr.rel target = $region3
    $region8: #{tpu_custom_call.1} parent=1 // loop_exit
      _
    %462 = vsyncpa [#allocation3], 1
    %s463 = scalar_lea.sflag [#allocation3], 1
    %464 = vsyncpa %s463, 1
    %465 = vsyncpa [#allocation6], 1
    %466 = vsyncpa [#allocation4], 1
    %s467 = scalar_lea.sflag [#allocation4], 1
    %468 = vsyncpa %s467, 1

</llo_original>
